<compile_context>
chip_gen: v6e
topology: v6e:2x2x1
jax: 0.10.0
libtpu: 0.0.40
codegen_flags: <defaults>
</compile_context>

<pallas_src>
import functools

import jax
import jax.numpy as jnp
from jax.experimental import pallas as pl
from jax.experimental.pallas import tpu as pltpu


def _conv_gemm_relu_kernel(p_ref, w_ref, o_ref, *, apply_relu):
    """Single-GEMM conv for one batch element.

    p_ref: (K*K*C_in, H_out*W_out)  bf16 im2col patches (contraction-major)
    w_ref: (C_out, K*K*C_in)        bf16 weight (OIHW flattened)
    o_ref: (C_out, H_out*W_out)     output, lane-dense on the last dim
    """
    acc = jnp.dot(w_ref[...], p_ref[...], preferred_element_type=jnp.float32)
    if apply_relu:
        acc = jnp.maximum(acc, 0.0)
    o_ref[...] = acc.astype(o_ref.dtype)


def basic_conv_forward(x_nchw, weight_oihw, *, stride=1, padding=0,
                       dilation=1, relu=True):
    """BasicConv.forward: Conv2d(bias=False, groups=1) + optional ReLU.

    x_nchw:      (N, C_in, H, W)          (PyTorch NCHW)
    weight_oihw: (C_out, C_in, K, K)      (PyTorch OIHW)
    returns:     (N, C_out, H_out, W_out) (NCHW)
    """
    # TODO(synk): groups > 1 not implemented (module default is groups=1).
    N, C_in, H, W = x_nchw.shape
    C_out, C_in_w, Kh, Kw = weight_oihw.shape
    assert C_in_w == C_in, "groups=1 only"
    H_out = (H + 2 * padding - dilation * (Kh - 1) - 1) // stride + 1
    W_out = (W + 2 * padding - dilation * (Kw - 1) - 1) // stride + 1
    M = H_out * W_out
    Kc = C_in * Kh * Kw

    # bf16 operands for the MXU; accumulation stays f32 inside the kernel.
    x_bf16 = x_nchw.astype(jnp.bfloat16)
    w2d = weight_oihw.reshape(C_out, Kc).astype(jnp.bfloat16)

    # im2col: (N, C_in*Kh*Kw, H_out, W_out); the feature dim is ordered
    # (C_in, kh, kw), matching the OIHW weight flattening above.  Keeping the
    # "NCHW"-style output makes the follow-up reshape contiguous (no transpose).
    patches = jax.lax.conv_general_dilated_patches(
        x_bf16,
        filter_shape=(Kh, Kw),
        window_strides=(stride, stride),
        padding=((padding, padding), (padding, padding)),
        rhs_dilation=(dilation, dilation),
        dimension_numbers=("NCHW", "OIHW", "NCHW"),
    ).reshape(N, Kc, M)

    kernel = functools.partial(_conv_gemm_relu_kernel, apply_relu=relu)

    out = pl.pallas_call(
        kernel,
        out_shape=jax.ShapeDtypeStruct((N, C_out, M), x_nchw.dtype),
        grid_spec=pltpu.PrefetchScalarGridSpec(
            num_scalar_prefetch=0,
            grid=(N,),
            in_specs=[
                # Per-batch patch matrix (Kc, M); batch dim squeezed out.
                pl.BlockSpec((None, Kc, M), lambda n: (n, 0, 0)),
                # Weight resident across grid steps (constant index map).
                pl.BlockSpec((C_out, Kc), lambda n: (0, 0)),
            ],
            out_specs=pl.BlockSpec((None, C_out, M), lambda n: (n, 0, 0)),
        ),
        compiler_params=pltpu.CompilerParams(
            dimension_semantics=("parallel",)),
    )(patches, w2d)

    # (N, C_out, H_out*W_out) -> (N, C_out, H_out, W_out): contiguous reshape,
    # already NCHW, so no transpose anywhere in the output path.
    return out.reshape(N, C_out, H_out, W_out)


if __name__ == "__main__":
    # BasicConv(in_planes=4, out_planes=8, kernel_size=3, padding=1)
    N, C_in, H, W = 2, 4, 16, 16
    C_out, K, PAD = 8, 3, 1

    key = jax.random.PRNGKey(0)
    kx, kw = jax.random.split(key)
    x = jax.random.normal(kx, (N, C_in, H, W), dtype=jnp.float32)
    # PyTorch-layout (OIHW) weight, deterministic init.
    weight = (jax.random.normal(kw, (C_out, C_in, K, K), dtype=jnp.float32)
              * 0.1)

    out = basic_conv_forward(x, weight, stride=1, padding=PAD, relu=True)
    out = jax.block_until_ready(out)

    # Reference: XLA conv on the same bf16-cast operands, f32 accumulation.
    ref = jax.lax.conv_general_dilated(
        x.astype(jnp.bfloat16), weight.astype(jnp.bfloat16),
        window_strides=(1, 1), padding=((PAD, PAD), (PAD, PAD)),
        dimension_numbers=("NCHW", "OIHW", "NCHW"),
        preferred_element_type=jnp.float32)
    ref = jnp.maximum(ref, 0.0)

    assert out.shape == (N, C_out, H, W)
    assert jnp.allclose(out, ref, atol=1e-2, rtol=1e-2), (
        float(jnp.max(jnp.abs(out - ref))))

    print("KERNEL_OK")
</pallas_src>

<mosaic_0001>
module attributes {stable_mosaic.version = 11 : i64} {
  func.func @_conv_gemm_relu_kernel(%arg0: i32, %arg1: memref<1x36x256xbf16, #tpu.memory_space<vmem>>, %arg2: memref<8x36xbf16, #tpu.memory_space<vmem>>, %arg3: memref<1x8x256xf32, #tpu.memory_space<vmem>>) attributes {dimension_semantics = [#tpu.dimension_semantics<parallel>], iteration_bounds = array<i64: 2>, scalar_prefetch = 0 : i64, scratch_operands = 0 : i64, tpu.core_type = #tpu.core_type<tc>, window_params = [{transform_indices = @transform_0, window_bounds = array<i64: 1, 36, 256>}, {pipeline_mode = #tpu.pipeline_mode<synchronous>, transform_indices = @transform_1, window_bounds = array<i64: 8, 36>}, {transform_indices = @transform_2, window_bounds = array<i64: 1, 8, 256>}]} {
    %c0 = arith.constant 0 : index
    %c0_0 = arith.constant 0 : index
    %0 = vector.load %arg2[%c0, %c0_0] : memref<8x36xbf16, #tpu.memory_space<vmem>>, vector<8x36xbf16>
    %c0_1 = arith.constant 0 : index
    %c0_2 = arith.constant 0 : index
    %c0_3 = arith.constant 0 : index
    %1 = vector.load %arg1[%c0_1, %c0_2, %c0_3] : memref<1x36x256xbf16, #tpu.memory_space<vmem>>, vector<1x36x256xbf16>
    %2 = vector.shape_cast %1 : vector<1x36x256xbf16> to vector<36x256xbf16>
    %cst = arith.constant dense<0.000000e+00> : vector<8x256xf32>
    %3 = tpu.matmul %0, %2, %cst {dimension_numbers = #tpu.dot_dimension_numbers<[1], [0], [0], [1], [0, 0, 1, 1], [], []>} : vector<8x36xbf16>, vector<36x256xbf16>, vector<8x256xf32> -> vector<8x256xf32>
    %cst_4 = arith.constant 0.000000e+00 : f32
    %4 = vector.broadcast %cst_4 : f32 to vector<8x256xf32>
    %5 = arith.maximumf %3, %4 : vector<8x256xf32>
    %c0_5 = arith.constant 0 : index
    %c0_6 = arith.constant 0 : index
    %c0_7 = arith.constant 0 : index
    %6 = vector.load %arg3[%c0_5, %c0_6, %c0_7] : memref<1x8x256xf32, #tpu.memory_space<vmem>>, vector<1x8x256xf32>
    %7 = vector.shape_cast %6 : vector<1x8x256xf32> to vector<8x256xf32>
    %8 = vector.shape_cast %5 : vector<8x256xf32> to vector<1x8x256xf32>
    tpu.vector_store %arg3[%c0_5, %c0_6, %c0_7], %8 {strides = array<i32>} : memref<1x8x256xf32, #tpu.memory_space<vmem>>, vector<1x8x256xf32>,
    return
  }
  func.func @transform_0(%arg0: i32) -> (i32, i32, i32) {
    %c0_i32 = arith.constant 0 : i32
    %c0_i32_0 = arith.constant 0 : i32
    %c0_i32_1 = arith.constant 0 : i32
    return %arg0, %c0_i32, %c0_i32_0 : i32, i32, i32
  }
  func.func @transform_1(%arg0: i32) -> (i32, i32) {
    %c0_i32 = arith.constant 0 : i32
    %c0_i32_0 = arith.constant 0 : i32
    %c0_i32_1 = arith.constant 0 : i32
    return %c0_i32, %c0_i32_0 : i32, i32
  }
  func.func @transform_2(%arg0: i32) -> (i32, i32, i32) {
    %c0_i32 = arith.constant 0 : i32
    %c0_i32_0 = arith.constant 0 : i32
    %c0_i32_1 = arith.constant 0 : i32
    return %arg0, %c0_i32, %c0_i32_0 : i32, i32, i32
  }
}

</mosaic_0001>

<llo_original>
// kernel: tpu_custom_call.1
$region0: #{tpu_custom_call.1}
  #allocation0 [shape = 'u32[]', space=smem, size = 0x4, offset = 0x4, fixed_abs, tag = 'smem constant byte address 0x4 - core index']
  #allocation1 [shape = 'u32[144,128]{1,0:T(1,128)}', space=vmem, size = 0x12000, scoped, tag = 'internal scratch']
  %s0 = inlined_call_operand.vmem [shape: bf16[2,36,256], index: 0, kind: input, shape index: {}]
  %s1 = inlined_call_operand.vmem [shape: bf16[8,36], index: 1, kind: input, shape index: {}]
  %s2 = inlined_call_operand.hbm [shape: f32[2,8,256], index: 2, kind: output, shape index: {}]
  %s3 = sld [smem:[#allocation0]]
  $region41: #{tpu_custom_call.1} parent=0
    _
  %s5 = ssub.s32 1, %s3
  %s6 = scalar_select 0, %s5, %s3
  $region1: #{tpu_custom_call.1} parent=0
    #allocation2 [shape = 'u8[16384]{0}', space=vmem, size = 0x4000, scoped, tag = 'output window, operand 0']
    #allocation3 [shape = 's32[2]{0}', space=sflag, size = 0x8, scoped, tag = 'scoped memory for tpu_custom_call.1']
    %7 = vsyncpa [#allocation3], 0
    %s8 = scalar_lea.sflag [#allocation3], 1
    %9 = vsyncpa %s8, 0
    loop: start=0, step=1, limit=4
    $region2: #{tpu_custom_call.1} parent=1 // loop_pre_header
      _
    $region3: #{tpu_custom_call.1} parent=1 // loop_header
      %s11 = sphi 0, %s15
      %p12 = scmp.ge.s32.totalorder %s11, 4
      %s21 = sphi 0, %s23
      %s24 = sphi 0, %s21
      %s25 = sphi 0, %s24
      %s41 = sphi 0, %s25
      %s45 = sphi 0, %s45
      %s47 = sphi 0, %s45
      %s48 = sphi 0, %s47
      %s62 = sphi 0, %s48
      %s68 = sphi 0, %s70
      %s71 = sphi 0, %s68
      %s72 = sphi 0, %s71
      %s88 = sphi 0, %s72
    $region4: #{tpu_custom_call.1} parent=1 // loop_header_branch
      %14 = sbr.rel (%p12) target = $region8
    $region5: #{tpu_custom_call.1} parent=1 // loop_body
      %s16 = ssub.s32 %s11, 1
      %s17 = ssub.s32 %s11, 2
      %s18 = sadd.s32 %s11, 1
      %s19 = ssub.s32 %s11, %s18
      %p20 = scmp.eq.s32.totalorder %s19, 0
      %s22 = sadd.s32 %s21, 1
      %s23 = scalar_select %p20, %s21, %s22
      %p26 = pneg %p20
      %p27 = scmp.eq.s32.totalorder %s11, 1
      %p28 = por %p26, %p27
      %p29 = scmp.ne.s32.totalorder %s21, %s24
      %p30 = scmp.eq.s32.totalorder %s11, 0
      %p31 = por %p29, %p30
      %p32 = scmp.ne.s32.totalorder %s21, %s24
      %p33 = scmp.eq.s32.totalorder %s16, 1
      %p34 = por %p32, %p33
      %p35 = scmp.ne.s32.totalorder %s24, %s25
      %p36 = scmp.eq.s32.totalorder %s16, 0
      %p37 = por %p35, %p36
      %p38 = scmp.ne.s32.totalorder %s24, %s25
      %p39 = scmp.eq.s32.totalorder %s17, 1
      %p40 = por %p38, %p39
      %p42 = scmp.ne.s32.totalorder %s25, %s41
      %p43 = scmp.eq.s32.totalorder %s17, 0
      %p44 = por %p42, %p43
      %s46 = sadd.s32 %s45, 1
      %p49 = scmp.eq.s32.totalorder %s11, 1
      %p50 = scmp.ne.s32.totalorder %s45, %s47
      %p51 = scmp.eq.s32.totalorder %s11, 0
      %p52 = por %p50, %p51
      %p53 = scmp.ne.s32.totalorder %s45, %s47
      %p54 = scmp.eq.s32.totalorder %s16, 1
      %p55 = por %p53, %p54
      %p56 = scmp.ne.s32.totalorder %s47, %s48
      %p57 = scmp.eq.s32.totalorder %s16, 0
      %p58 = por %p56, %p57
      %p59 = scmp.ne.s32.totalorder %s47, %s48
      %p60 = scmp.eq.s32.totalorder %s17, 1
      %p61 = por %p59, %p60
      %p63 = scmp.ne.s32.totalorder %s48, %s62
      %p64 = scmp.eq.s32.totalorder %s17, 0
      %p65 = por %p63, %p64
      %s66 = ssub.s32 %s11, %s18
      %p67 = scmp.eq.s32.totalorder %s66, 0
      %s69 = sadd.s32 %s68, 1
      %s70 = scalar_select %p67, %s68, %s69
      %p73 = pneg %p67
      %p74 = scmp.eq.s32.totalorder %s11, 1
      %p75 = por %p73, %p74
      %p76 = scmp.ne.s32.totalorder %s68, %s71
      %p77 = scmp.eq.s32.totalorder %s11, 0
      %p78 = por %p76, %p77
      %p79 = scmp.ne.s32.totalorder %s68, %s71
      %p80 = scmp.eq.s32.totalorder %s16, 1
      %p81 = por %p79, %p80
      %p82 = scmp.ne.s32.totalorder %s71, %s72
      %p83 = scmp.eq.s32.totalorder %s16, 0
      %p84 = por %p82, %p83
      %p85 = scmp.ne.s32.totalorder %s71, %s72
      %p86 = scmp.eq.s32.totalorder %s17, 1
      %p87 = por %p85, %p86
      %p89 = scmp.ne.s32.totalorder %s72, %s88
      %p90 = scmp.eq.s32.totalorder %s17, 0
      %p91 = por %p89, %p90
      %p92 = scmp.le.s32.totalorder 1, %s11
      %p93 = scmp.lt.s32.totalorder %s11, 3
      %p94 = pnand %p92, %p93
      %p95 = pneg %p94
      // Predicated region
      $region9: #{tpu_custom_call.1} parent=5 // pred_check
        _
      $region10: #{tpu_custom_call.1} parent=5 // pred_check_branch
        %97 = sbr.rel (%p94) target = $region12
      $region11: #{tpu_custom_call.1} parent=5 // pred_region
        %s98 = ssub.s32 %s11, 1
        // Predicated region
        $region13: #{tpu_custom_call.1} parent=11 // pred_check
          %p99 = pneg %p58
        $region14: #{tpu_custom_call.1} parent=11 // pred_check_branch
          %101 = sbr.rel (%p99) target = $region16
        $region15: #{tpu_custom_call.1} parent=11 // pred_region
          _
        $region16: #{tpu_custom_call.1} parent=11 // pred_fallthru
          _
      $region12: #{tpu_custom_call.1} parent=5 // pred_fallthru
        _
      %p102 = scmp.lt.s32.totalorder %s11, 2
      // Predicated region
      $region17: #{tpu_custom_call.1} parent=5 // pred_check
        %p103 = pneg %p102
      $region18: #{tpu_custom_call.1} parent=5 // pred_check_branch
        %105 = sbr.rel (%p103) target = $region20
      $region19: #{tpu_custom_call.1} parent=5 // pred_region
        // Predicated region
        $region21: #{tpu_custom_call.1} parent=19 // pred_check
          %p106 = pneg %p31
        $region22: #{tpu_custom_call.1} parent=19 // pred_check_branch
          %108 = sbr.rel (%p106) target = $region24
        $region23: #{tpu_custom_call.1} parent=19 // pred_region
          %p109 = scmp.lt.s32.totalorder %s11, 1
          %s110 = scalar_select %p109, %s11, 1
          %s111 = smul.addr %s110, 10
          %s112 = smul.addr %s111, 4
          %s113 = scalar_lea.vmem %s0, %s112
        $region24: #{tpu_custom_call.1} parent=19 // pred_fallthru
          _
      $region20: #{tpu_custom_call.1} parent=5 // pred_fallthru
        _
      %p114 = scmp.le.s32.totalorder 1, %s11
      %p115 = scmp.lt.s32.totalorder %s11, 3
      %p116 = pnand %p114, %p115
      %p117 = pneg %p116
      // Predicated region
      $region25: #{tpu_custom_call.1} parent=5 // pred_check
        _
      $region26: #{tpu_custom_call.1} parent=5 // pred_check_branch
        %119 = sbr.rel (%p116) target = $region28
      $region27: #{tpu_custom_call.1} parent=5 // pred_region
        %s120 = ssub.s32 %s11, 1
        %p121 = scmp.lt.s32.totalorder %s16, 1
        %s122 = scalar_select %p121, %s16, 1
        %s123 = smul.addr %s122, 10
        %s124 = smul.addr %s123, 4
        %s125 = scalar_lea.vmem %s0, %s124
        %p126 = pneg %p37
        %p127 = pneg %p34
        %p128 = pneg %p58
        %p129 = pneg %p55
        %p130 = pneg %p84
        %p131 = pneg %p81
        %s132 = sand.u32 %s71, 1
        %s133 = scalar_lea.sflag [#allocation3], %s132
        %s134 = sand.u32 %s71, 1
        %s135 = smul.addr %s134, 16
        %s136 = scalar_lea.vmem [#allocation2], %s135
        %p137 = scmp.lt.s32.totalorder %s16, 1
        %s138 = scalar_select %p137, %s16, 1
        %s139 = smul.addr %s138, 10
        %s140 = smul.addr %s139, 4
        %s141 = scalar_lea.vmem %s0, %s140
        %v143 = vld [vmem:[%s1] sm:$0xf]
        %v144 = vld [vmem:[%s141] sm:$0xff]
        %v145 = vld [vmem:[%s141 + $0x8] sm:$0xff]
        %v146 = vld [vmem:[%s141 + $0x10] sm:$0xff]
        %v147 = vld [vmem:[%s141 + $0x18] sm:$0xff]
        %v148 = vld [vmem:[%s141 + $0x20] sm:$0x33]
        %v154 = vunpack.c.l.b16 %v144
        %v155 = vunpack.c.h.b16 %v144
        %v156 = vunpack.c.l.b16 %v145
        %v157 = vunpack.c.h.b16 %v145
        %v158 = vunpack.c.l.b16 %v146
        %v159 = vunpack.c.h.b16 %v146
        %v160 = vunpack.c.l.b16 %v147
        %v161 = vunpack.c.h.b16 %v147
        %v162 = vunpack.c.l.b16 %v148
        %v163 = vunpack.c.h.b16 %v148
        %v164 = vpack.c.b16 %v156, %v154
        %v165 = vpack.c.b16 %v157, %v155
        %v166 = vpack.c.b16 %v160, %v158
        %v167 = vpack.c.b16 %v161, %v159
        %v168 = vpack.c.b16 %v162, %v162
        %v169 = vpack.c.b16 %v163, %v163
        %vm174 = vcmask 293888
        %v176 = vsel %vm174, %v143, 0
        %vm178 = vcmask 1041408
        %v180 = vsel %vm178, %v168, 0
        %v183 = vsel %vm178, %v169, 0
        %185 = vmatprep.subr.bf16.mxu0 0
        %186 = vmatpush1.bf16.msra.mxu0 0
        %187 = vmatprep.subr.bf16.mxu0 0
        %188 = vmatpush1.bf16.msra.mxu0 0
        %189 = vmatprep.subr.bf16.mxu0 0
        %190 = vmatpush1.bf16.msra.mxu0 0
        %191 = vmatprep.subr.bf16.mxu0 0
        %192 = vmatpush1.bf16.msra.mxu0 0
        %193 = vmatprep.subr.bf16.mxu0 0
        %194 = vmatpush1.bf16.msra.mxu0 0
        %195 = vmatprep.subr.bf16.mxu0 %v183
        %196 = vmatpush1.bf16.msra.mxu0 %v180
        %197 = vmatprep.subr.bf16.mxu0 %v167
        %198 = vmatpush1.bf16.msra.mxu0 %v166
        %199 = vmatprep.subr.bf16.mxu0 %v165
        %200 = vmatpush1.bf16.msra.mxu0 %v164
        %201 = vmatprep.subr.bf16.mxu0 0
        %202 = vmatpush2.bf16.msra.mxu0 0
        %203 = vmatprep.subr.bf16.mxu0 0
        %204 = vmatpush2.bf16.msra.mxu0 0
        %205 = vmatprep.subr.bf16.mxu0 0
        %206 = vmatpush2.bf16.msra.mxu0 0
        %207 = vmatprep.subr.bf16.mxu0 0
        %208 = vmatpush2.bf16.msra.mxu0 0
        %209 = vmatprep.subr.bf16.mxu0 0
        %210 = vmatpush2.bf16.msra.mxu0 0
        %211 = vmatprep.subr.bf16.mxu0 0
        %212 = vmatpush2.bf16.msra.mxu0 0
        %213 = vmatprep.subr.bf16.mxu0 0
        %214 = vmatpush2.bf16.msra.mxu0 0
        %215 = vmatprep.subr.bf16.mxu0 0
        %216 = vmatpush2.bf16.msra.mxu0 0
        %217 = vmatprep.mubr.bf16.mxu0 0
        %218 = vmatmul.mubr.bf16.gmra.mxu0 %v176
        %v219 = vpop.f32.mrf.mxu0
        %v220 = vadd.f32 0.0, %v219
        %v221 = vpop.f32.mrf.mxu0
        %v222 = vadd.f32 0.0, %v221
        %v223 = vpop.f32.mrf.mxu0
        %v224 = vpop.f32.mrf.mxu0
        %225 = vdwg.mxu0
        %v226 = vmax.f32 %v220, 0.0
        %v227 = vmax.f32 %v222, 0.0
        %228 = vst [vmem:[%s136] sm:$0xff] %v226
        %229 = vst [vmem:[%s136 + $0x8] sm:$0xff] %v227
        %s230 = sand.u32 %s71, 1
        %s231 = scalar_lea.sflag [#allocation3], %s230
        %s232 = sand.u32 %s71, 1
        %s233 = smul.addr %s232, 16
        %s234 = scalar_lea.vmem [#allocation2], %s233
        // Predicated region
        $region29: #{tpu_custom_call.1} parent=27 // pred_check
          %p235 = pneg %p81
        $region30: #{tpu_custom_call.1} parent=27 // pred_check_branch
          %237 = sbr.rel (%p235) target = $region32
        $region31: #{tpu_custom_call.1} parent=27 // pred_region
          %s239 = ssub.s32 256, 256
          %240 = vsyncadd %s231, %s239
          %s241 = smul.addr %s16, 2
          %s242 = smul.addr %s241, 128
          %s243 = scalar_lea.hbm %s2, %s242
          %s245 = sshll.u32 %s234, 4
          %s246 = int_to_ptr.vmem [resolvable:$true] %s245
          %248 = dma.vmem_to_hbm [thread:$0]  %s246, 256, %s243, %s231
        $region32: #{tpu_custom_call.1} parent=27 // pred_fallthru
          _
      $region28: #{tpu_custom_call.1} parent=5 // pred_fallthru
        _
      %p249 = scmp.le.s32.totalorder 2, %s11
      // Predicated region
      $region33: #{tpu_custom_call.1} parent=5 // pred_check
        %p250 = pneg %p249
      $region34: #{tpu_custom_call.1} parent=5 // pred_check_branch
        %252 = sbr.rel (%p250) target = $region36
      $region35: #{tpu_custom_call.1} parent=5 // pred_region
        %s253 = ssub.s32 %s11, 2
        // Predicated region
        $region37: #{tpu_custom_call.1} parent=35 // pred_check
          %p254 = pneg %p87
        $region38: #{tpu_custom_call.1} parent=35 // pred_check_branch
          %256 = sbr.rel (%p254) target = $region40
        $region39: #{tpu_custom_call.1} parent=35 // pred_region
          %s257 = sand.u32 %s72, 1
          %s258 = scalar_lea.sflag [#allocation3], %s257
          %s259 = sand.u32 %s72, 1
          %s260 = smul.addr %s259, 16
          %s261 = scalar_lea.vmem [#allocation2], %s260
          %262 = dma.done %s258, 256
        $region40: #{tpu_custom_call.1} parent=35 // pred_fallthru
          _
      $region36: #{tpu_custom_call.1} parent=5 // pred_fallthru
        _
    $region6: #{tpu_custom_call.1} parent=1 // loop_footer
      %s15 = sadd.s32 1, %s11
    $region7: #{tpu_custom_call.1} parent=1 // loop_footer_branch
      %10 = sbr.rel target = $region3
    $region8: #{tpu_custom_call.1} parent=1 // loop_exit
      _
    %263 = vsyncpa [#allocation3], 1
    %s264 = scalar_lea.sflag [#allocation3], 1
    %265 = vsyncpa %s264, 1

</llo_original>
